<compile_context>
chip_gen: v5e
topology: v5e:2x2
jax: 0.10.0
libtpu: 0.0.40
codegen_flags: <defaults>
</compile_context>

<pallas_src>
import functools

import jax
import jax.numpy as jnp
from jax.experimental import pallas as pl
from jax.experimental.pallas import tpu as pltpu

NUM_POINTS = 100   # MLP_agent_ontop(num_points=100, num_layers=2)
P_PAD = 128        # lane-padded feature dim (multiple of 128)
HIDDEN_DIM = 128   # stand-in rnn hidden dim (chosen lane-dense)


def _round_up(x, m):
    return ((x + m - 1) // m) * m


# ----------------------------------------------------------------------------
# Fused kernel: base stand-in + all agent heads, one batch block per grid step.
# ----------------------------------------------------------------------------
def _fused_kernel(x_ref, h_ref, wbx_ref, bbx_ref, wh_ref,
                  w1_ref, b1_ref, w2_ref, b2_ref,
                  q_ref, h_out_ref, *, n_agents):
    # bf16 MXU operands, f32 accumulation, f32 epilogue.
    x = x_ref[...].astype(jnp.bfloat16)               # (Bblk, D_in)
    h = h_ref[...].astype(jnp.bfloat16)                # (Bblk, H)

    # Base net stand-in: both x-driven matmuls fused into one MXU push.
    #   bx[:, :P_PAD] = x @ Wb + bb   (feature/logit head, zero-padded cols)
    #   bx[:, P_PAD:] = x @ Wx + bh   (recurrent input path)
    bx = jnp.dot(x, wbx_ref[...],
                 preferred_element_type=jnp.float32) + bbx_ref[...]
    base_out = jnp.tanh(bx[:, :P_PAD])                 # (Bblk, P_PAD) f32
    h_new = jnp.tanh(
        bx[:, P_PAD:]
        + jnp.dot(h, wh_ref[...], preferred_element_type=jnp.float32))

    # h is written exactly once per batch block (no per-agent replication).
    h_out_ref[...] = h_new.astype(h_out_ref.dtype)

    # Heads, layer 1: all agents folded into one wide lane-dense matmul.
    h1 = jnp.maximum(
        jnp.dot(base_out.astype(jnp.bfloat16), w1_ref[...],
                preferred_element_type=jnp.float32) + b1_ref[...],
        0.0)                                           # (Bblk, A*P_PAD) f32
    h1 = h1.astype(jnp.bfloat16)

    # Heads, layer 2: per-agent matmul on lane-aligned slices (small static
    # unroll; switch to lax.fori_loop if n_agents grows large).
    for a in range(n_agents):
        h1_a = h1[:, a * P_PAD:(a + 1) * P_PAD]        # (Bblk, P_PAD) bf16
        q_a = (jnp.dot(h1_a, w2_ref[a],
                       preferred_element_type=jnp.float32) + b2_ref[a])
        q_ref[a] = q_a.astype(q_ref.dtype)


# ----------------------------------------------------------------------------
# Full SACAgent_sharedbase.forward
# ----------------------------------------------------------------------------
def sac_sharedbase_forward(inputs, hidden_state, base_params, head_params,
                           n_agents, batch_block=256):
    """
    inputs:       (n_agents, B, D_in)   -- the inputs.size(0) == n_agents branch
    hidden_state: (B, n_agents, H)
    returns:      (q_cat:   (n_agents * B, NUM_POINTS),
                   hiddens: (1, n_agents * B, H))
    """
    assert inputs.shape[0] == n_agents
    x0 = inputs[0]                        # inputs[0]
    h0 = hidden_state[:, 0]               # hidden_state[:, 0]
    B, d_in = x0.shape
    H = h0.shape[1]

    # Pad the batch to a sublane-friendly multiple of the batch block.
    b8 = _round_up(B, 8)
    blk = min(batch_block, b8)
    b_pad = _round_up(b8, blk)
    if b_pad != B:
        x0 = jnp.pad(x0, ((0, b_pad - B), (0, 0)))
        h0 = jnp.pad(h0, ((0, b_pad - B), (0, 0)))

    def _resident(arr):  # weight: full-array block, stays VMEM-resident
        nd = arr.ndim
        return pl.BlockSpec(arr.shape, lambda i, _nd=nd: (0,) * _nd)

    kernel = functools.partial(_fused_kernel, n_agents=n_agents)
    q_pad, h_new = pl.pallas_call(
        kernel,
        grid=(b_pad // blk,),
        in_specs=[
            pl.BlockSpec((blk, d_in), lambda i: (i, 0)),
            pl.BlockSpec((blk, H), lambda i: (i, 0)),
            _resident(base_params["Wbx"]),
            _resident(base_params["bbx"]),
            _resident(base_params["Wh"]),
            _resident(head_params["W1cat"]),
            _resident(head_params["b1cat"]),
            _resident(head_params["W2"]),
            _resident(head_params["b2"]),
        ],
        out_specs=(
            pl.BlockSpec((n_agents, blk, P_PAD), lambda i: (0, i, 0)),
            pl.BlockSpec((blk, HIDDEN_DIM), lambda i: (i, 0)),
        ),
        out_shape=(
            jax.ShapeDtypeStruct((n_agents, b_pad, P_PAD), jnp.float32),
            jax.ShapeDtypeStruct((b_pad, HIDDEN_DIM), jnp.float32),
        ),
        compiler_params=pltpu.CompilerParams(
            dimension_semantics=("parallel",)),
    )(x0, h0,
      base_params["Wbx"], base_params["bbx"], base_params["Wh"],
      head_params["W1cat"], head_params["b1cat"],
      head_params["W2"], head_params["b2"])

    # torch.cat(qs): (A*B, 100) -- drop batch padding, then slice the
    # lane-padded columns back to 100 (kept only for interface fidelity).
    q_cat = q_pad[:, :B, :].reshape(n_agents * B, P_PAD)[:, :NUM_POINTS]
    # torch.cat([h] * n_agents).unsqueeze(0): (1, A*B, H) -- replicate in the
    # wrapper instead of writing n_agents identical copies from the kernel.
    h_new = h_new[:B]
    hiddens = jnp.broadcast_to(
        h_new[None], (n_agents, B, HIDDEN_DIM)).reshape(1, n_agents * B,
                                                        HIDDEN_DIM)
    return q_cat, hiddens


# ----------------------------------------------------------------------------
# Parameter construction (PyTorch-Linear-style uniform init) + kernel packing
# ----------------------------------------------------------------------------
def _linear_init(key, fan_in, shape):
    bound = 1.0 / jnp.sqrt(jnp.float32(fan_in))
    return jax.random.uniform(key, shape, jnp.float32, -bound, bound)


def make_raw_params(key, d_in, n_agents):
    ks = jax.random.split(key, 9)
    return {
        # base stand-in
        "Wb": _linear_init(ks[0], d_in, (d_in, NUM_POINTS)),
        "bb": _linear_init(ks[1], d_in, (1, NUM_POINTS)),
        "Wx": _linear_init(ks[2], d_in, (d_in, HIDDEN_DIM)),
        "Wh": _linear_init(ks[3], HIDDEN_DIM, (HIDDEN_DIM, HIDDEN_DIM)),
        "bh": _linear_init(ks[4], HIDDEN_DIM, (1, HIDDEN_DIM)),
        # per-agent heads: Linear(100,100) -> ReLU -> Linear(100,100)
        "W1": _linear_init(ks[5], NUM_POINTS,
                           (n_agents, NUM_POINTS, NUM_POINTS)),
        "b1": _linear_init(ks[6], NUM_POINTS, (n_agents, 1, NUM_POINTS)),
        "W2": _linear_init(ks[7], NUM_POINTS,
                           (n_agents, NUM_POINTS, NUM_POINTS)),
        "b2": _linear_init(ks[8], NUM_POINTS, (n_agents, 1, NUM_POINTS)),
    }


def pack_params(raw, n_agents):
    """Pad feature dims to 128, concatenate per-agent layer-1 weights along
    the output axis, and store matmul weights as bf16 (biases stay f32 so the
    epilogue remains f32)."""
    pad_cols = P_PAD - NUM_POINTS
    wb_pad = jnp.pad(raw["Wb"], ((0, 0), (0, pad_cols)))
    bb_pad = jnp.pad(raw["bb"], ((0, 0), (0, pad_cols)))
    base_params = {
        "Wbx": jnp.concatenate([wb_pad, raw["Wx"]],
                               axis=1).astype(jnp.bfloat16),  # (D_in, P_PAD+H)
        "bbx": jnp.concatenate([bb_pad, raw["bh"]], axis=1),  # (1, P_PAD+H) f32
        "Wh": raw["Wh"].astype(jnp.bfloat16),                 # (H, H)
    }

    def pad_w(w):  # (A, 100, 100) -> (A, 128, 128), zero-padded both dims
        return jnp.pad(w, ((0, 0), (0, pad_cols), (0, pad_cols)))

    def pad_b(b):  # (A, 1, 100) -> (A, 1, 128)
        return jnp.pad(b, ((0, 0), (0, 0), (0, pad_cols)))

    w1_pad = pad_w(raw["W1"])
    b1_pad = pad_b(raw["b1"])
    head_params = {
        "W1cat": jnp.concatenate(
            [w1_pad[a] for a in range(n_agents)],
            axis=1).astype(jnp.bfloat16),                      # (P_PAD, A*P_PAD)
        "b1cat": jnp.concatenate([b1_pad[a] for a in range(n_agents)],
                                 axis=1),                      # (1, A*P_PAD) f32
        "W2": pad_w(raw["W2"]).astype(jnp.bfloat16),           # (A, P_PAD, P_PAD)
        "b2": pad_b(raw["b2"]),                                # (A, 1, P_PAD) f32
    }
    return base_params, head_params


# ----------------------------------------------------------------------------
# Pure-JAX references.
#   * matched: same bf16-operand / f32-accumulate recipe as the kernel
#              (tight tolerance check).
#   * f32:     full float32 math (loose sanity check on bf16 rounding).
# ----------------------------------------------------------------------------
def _reference_matched(inputs, hidden_state, raw, n_agents):
    x0 = inputs[0].astype(jnp.bfloat16)
    h0 = hidden_state[:, 0].astype(jnp.bfloat16)
    wb = raw["Wb"].astype(jnp.bfloat16)
    wx = raw["Wx"].astype(jnp.bfloat16)
    wh = raw["Wh"].astype(jnp.bfloat16)
    base_out = jnp.tanh(
        jnp.dot(x0, wb, preferred_element_type=jnp.float32) + raw["bb"])
    h_new = jnp.tanh(
        (jnp.dot(x0, wx, preferred_element_type=jnp.float32) + raw["bh"])
        + jnp.dot(h0, wh, preferred_element_type=jnp.float32))
    base_bf = base_out.astype(jnp.bfloat16)
    qs = []
    for a in range(n_agents):
        w1 = raw["W1"][a].astype(jnp.bfloat16)
        w2 = raw["W2"][a].astype(jnp.bfloat16)
        hid = jnp.maximum(
            jnp.dot(base_bf, w1, preferred_element_type=jnp.float32)
            + raw["b1"][a], 0.0)
        qs.append(jnp.dot(hid.astype(jnp.bfloat16), w2,
                          preferred_element_type=jnp.float32) + raw["b2"][a])
    q_cat = jnp.concatenate(qs, axis=0)
    hiddens = jnp.concatenate([h_new] * n_agents, axis=0)[None]
    return q_cat, hiddens


def _reference_f32(inputs, hidden_state, raw, n_agents):
    x0 = inputs[0]
    h0 = hidden_state[:, 0]
    base_out = jnp.tanh(x0 @ raw["Wb"] + raw["bb"])
    h_new = jnp.tanh(x0 @ raw["Wx"] + h0 @ raw["Wh"] + raw["bh"])
    qs = []
    for a in range(n_agents):
        hid = jnp.maximum(base_out @ raw["W1"][a] + raw["b1"][a], 0.0)
        qs.append(hid @ raw["W2"][a] + raw["b2"][a])
    q_cat = jnp.concatenate(qs, axis=0)
    hiddens = jnp.concatenate([h_new] * n_agents, axis=0)[None]
    return q_cat, hiddens


if __name__ == "__main__":
    n_agents = 3
    batch = 2
    d_in = 16

    key = jax.random.PRNGKey(0)
    k_in, k_h, k_p = jax.random.split(key, 3)

    inputs = jax.random.normal(k_in, (n_agents, batch, d_in), jnp.float32)
    hidden_state = jax.random.normal(k_h, (batch, n_agents, HIDDEN_DIM),
                                     jnp.float32)
    raw = make_raw_params(k_p, d_in, n_agents)
    base_params, head_params = pack_params(raw, n_agents)

    fwd = jax.jit(functools.partial(sac_sharedbase_forward,
                                    n_agents=n_agents))
    q_cat, hiddens = fwd(inputs, hidden_state, base_params, head_params)
    jax.block_until_ready((q_cat, hiddens))

    assert q_cat.shape == (n_agents * batch, NUM_POINTS)
    assert hiddens.shape == (1, n_agents * batch, HIDDEN_DIM)

    # Tight check against a matched-precision (bf16 operand) reference.
    q_m, h_m = _reference_matched(inputs, hidden_state, raw, n_agents)
    assert jnp.allclose(q_cat, q_m, rtol=1e-4, atol=1e-4), "q mismatch (matched)"
    assert jnp.allclose(hiddens, h_m, rtol=1e-4, atol=1e-4), "h mismatch (matched)"

    # Loose sanity check against the full-f32 reference (bf16 rounding only).
    q_f, h_f = _reference_f32(inputs, hidden_state, raw, n_agents)
    assert jnp.allclose(q_cat, q_f, rtol=3e-2, atol=3e-2), "q mismatch (f32)"
    assert jnp.allclose(hiddens, h_f, rtol=3e-2, atol=3e-2), "h mismatch (f32)"

    print("KERNEL_OK")
</pallas_src>

<mosaic_0001>
module attributes {stable_mosaic.version = 11 : i64} {
  func.func @_fused_kernel(%arg0: i32, %arg1: memref<8x16xf32, #tpu.memory_space<vmem>>, %arg2: memref<8x128xf32, #tpu.memory_space<vmem>>, %arg3: memref<16x256xbf16, #tpu.memory_space<vmem>>, %arg4: memref<1x256xf32, #tpu.memory_space<vmem>>, %arg5: memref<128x128xbf16, #tpu.memory_space<vmem>>, %arg6: memref<128x384xbf16, #tpu.memory_space<vmem>>, %arg7: memref<1x384xf32, #tpu.memory_space<vmem>>, %arg8: memref<3x128x128xbf16, #tpu.memory_space<vmem>>, %arg9: memref<3x1x128xf32, #tpu.memory_space<vmem>>, %arg10: memref<3x8x128xf32, #tpu.memory_space<vmem>>, %arg11: memref<8x128xf32, #tpu.memory_space<vmem>>) attributes {dimension_semantics = [#tpu.dimension_semantics<parallel>], iteration_bounds = array<i64: 1>, scalar_prefetch = 0 : i64, scratch_operands = 0 : i64, tpu.core_type = #tpu.core_type<tc>, window_params = [{transform_indices = @transform_0, window_bounds = array<i64: 8, 16>}, {transform_indices = @transform_1, window_bounds = array<i64: 8, 128>}, {pipeline_mode = #tpu.pipeline_mode<synchronous>, transform_indices = @transform_2, window_bounds = array<i64: 16, 256>}, {pipeline_mode = #tpu.pipeline_mode<synchronous>, transform_indices = @transform_3, window_bounds = array<i64: 1, 256>}, {pipeline_mode = #tpu.pipeline_mode<synchronous>, transform_indices = @transform_4, window_bounds = array<i64: 128, 128>}, {pipeline_mode = #tpu.pipeline_mode<synchronous>, transform_indices = @transform_5, window_bounds = array<i64: 128, 384>}, {pipeline_mode = #tpu.pipeline_mode<synchronous>, transform_indices = @transform_6, window_bounds = array<i64: 1, 384>}, {pipeline_mode = #tpu.pipeline_mode<synchronous>, transform_indices = @transform_7, window_bounds = array<i64: 3, 128, 128>}, {pipeline_mode = #tpu.pipeline_mode<synchronous>, transform_indices = @transform_8, window_bounds = array<i64: 3, 1, 128>}, {transform_indices = @transform_9, window_bounds = array<i64: 3, 8, 128>}, {transform_indices = @transform_10, window_bounds = array<i64: 8, 128>}]} {
    %c0 = arith.constant 0 : index
    %c0_0 = arith.constant 0 : index
    %0 = vector.load %arg1[%c0, %c0_0] : memref<8x16xf32, #tpu.memory_space<vmem>>, vector<8x16xf32>
    %1 = arith.truncf %0 : vector<8x16xf32> to vector<8x16xbf16>
    %c0_1 = arith.constant 0 : index
    %c0_2 = arith.constant 0 : index
    %2 = vector.load %arg2[%c0_1, %c0_2] : memref<8x128xf32, #tpu.memory_space<vmem>>, vector<8x128xf32>
    %3 = arith.truncf %2 : vector<8x128xf32> to vector<8x128xbf16>
    %c0_3 = arith.constant 0 : index
    %c0_4 = arith.constant 0 : index
    %4 = vector.load %arg3[%c0_3, %c0_4] : memref<16x256xbf16, #tpu.memory_space<vmem>>, vector<16x256xbf16>
    %cst = arith.constant dense<0.000000e+00> : vector<8x256xf32>
    %5 = tpu.matmul %1, %4, %cst {dimension_numbers = #tpu.dot_dimension_numbers<[1], [0], [0], [1], [0, 0, 1, 1], [], []>} : vector<8x16xbf16>, vector<16x256xbf16>, vector<8x256xf32> -> vector<8x256xf32>
    %c0_5 = arith.constant 0 : index
    %c0_6 = arith.constant 0 : index
    %6 = vector.load %arg4[%c0_5, %c0_6] : memref<1x256xf32, #tpu.memory_space<vmem>>, vector<1x256xf32>
    %7 = vector.broadcast %6 : vector<1x256xf32> to vector<8x256xf32>
    %8 = arith.addf %5, %7 : vector<8x256xf32>
    %9 = vector.extract_strided_slice %8 {offsets = [0, 0], sizes = [8, 128], strides = [1, 1]} : vector<8x256xf32> to vector<8x128xf32>
    %10 = math.tanh %9 : vector<8x128xf32>
    %11 = vector.extract_strided_slice %8 {offsets = [0, 128], sizes = [8, 128], strides = [1, 1]} : vector<8x256xf32> to vector<8x128xf32>
    %c0_7 = arith.constant 0 : index
    %c0_8 = arith.constant 0 : index
    %12 = vector.load %arg5[%c0_7, %c0_8] : memref<128x128xbf16, #tpu.memory_space<vmem>>, vector<128x128xbf16>
    %cst_9 = arith.constant dense<0.000000e+00> : vector<8x128xf32>
    %13 = tpu.matmul %3, %12, %cst_9 {dimension_numbers = #tpu.dot_dimension_numbers<[1], [0], [0], [1], [0, 0, 1, 1], [], []>} : vector<8x128xbf16>, vector<128x128xbf16>, vector<8x128xf32> -> vector<8x128xf32>
    %14 = arith.addf %11, %13 : vector<8x128xf32>
    %15 = math.tanh %14 : vector<8x128xf32>
    %c0_10 = arith.constant 0 : index
    %c0_11 = arith.constant 0 : index
    %16 = vector.load %arg11[%c0_10, %c0_11] : memref<8x128xf32, #tpu.memory_space<vmem>>, vector<8x128xf32>
    tpu.vector_store %arg11[%c0_10, %c0_11], %15 {strides = array<i32>} : memref<8x128xf32, #tpu.memory_space<vmem>>, vector<8x128xf32>,
    %17 = arith.truncf %10 : vector<8x128xf32> to vector<8x128xbf16>
    %c0_12 = arith.constant 0 : index
    %c0_13 = arith.constant 0 : index
    %18 = vector.load %arg6[%c0_12, %c0_13] : memref<128x384xbf16, #tpu.memory_space<vmem>>, vector<128x384xbf16>
    %cst_14 = arith.constant dense<0.000000e+00> : vector<8x384xf32>
    %19 = tpu.matmul %17, %18, %cst_14 {dimension_numbers = #tpu.dot_dimension_numbers<[1], [0], [0], [1], [0, 0, 1, 1], [], []>} : vector<8x128xbf16>, vector<128x384xbf16>, vector<8x384xf32> -> vector<8x384xf32>
    %c0_15 = arith.constant 0 : index
    %c0_16 = arith.constant 0 : index
    %20 = vector.load %arg7[%c0_15, %c0_16] : memref<1x384xf32, #tpu.memory_space<vmem>>, vector<1x384xf32>
    %21 = vector.broadcast %20 : vector<1x384xf32> to vector<8x384xf32>
    %22 = arith.addf %19, %21 : vector<8x384xf32>
    %cst_17 = arith.constant 0.000000e+00 : f32
    %23 = vector.broadcast %cst_17 : f32 to vector<8x384xf32>
    %24 = arith.maximumf %22, %23 : vector<8x384xf32>
    %25 = arith.truncf %24 : vector<8x384xf32> to vector<8x384xbf16>
    %26 = vector.extract_strided_slice %25 {offsets = [0, 0], sizes = [8, 128], strides = [1, 1]} : vector<8x384xbf16> to vector<8x128xbf16>
    %c0_18 = arith.constant 0 : index
    %c0_19 = arith.constant 0 : index
    %c0_20 = arith.constant 0 : index
    %27 = vector.load %arg8[%c0_18, %c0_19, %c0_20] : memref<3x128x128xbf16, #tpu.memory_space<vmem>>, vector<1x128x128xbf16>
    %28 = vector.shape_cast %27 : vector<1x128x128xbf16> to vector<128x128xbf16>
    %cst_21 = arith.constant dense<0.000000e+00> : vector<8x128xf32>
    %29 = tpu.matmul %26, %28, %cst_21 {dimension_numbers = #tpu.dot_dimension_numbers<[1], [0], [0], [1], [0, 0, 1, 1], [], []>} : vector<8x128xbf16>, vector<128x128xbf16>, vector<8x128xf32> -> vector<8x128xf32>
    %c0_22 = arith.constant 0 : index
    %c0_23 = arith.constant 0 : index
    %c0_24 = arith.constant 0 : index
    %30 = vector.load %arg9[%c0_22, %c0_23, %c0_24] : memref<3x1x128xf32, #tpu.memory_space<vmem>>, vector<1x1x128xf32>
    %31 = vector.shape_cast %30 : vector<1x1x128xf32> to vector<1x128xf32>
    %32 = vector.broadcast %31 : vector<1x128xf32> to vector<8x128xf32>
    %33 = arith.addf %29, %32 : vector<8x128xf32>
    %c0_25 = arith.constant 0 : index
    %c0_26 = arith.constant 0 : index
    %c0_27 = arith.constant 0 : index
    %34 = vector.load %arg10[%c0_25, %c0_26, %c0_27] : memref<3x8x128xf32, #tpu.memory_space<vmem>>, vector<1x8x128xf32>
    %35 = vector.shape_cast %34 : vector<1x8x128xf32> to vector<8x128xf32>
    %36 = vector.shape_cast %33 : vector<8x128xf32> to vector<1x8x128xf32>
    tpu.vector_store %arg10[%c0_25, %c0_26, %c0_27], %36 {strides = array<i32>} : memref<3x8x128xf32, #tpu.memory_space<vmem>>, vector<1x8x128xf32>,
    %37 = vector.extract_strided_slice %25 {offsets = [0, 128], sizes = [8, 128], strides = [1, 1]} : vector<8x384xbf16> to vector<8x128xbf16>
    %c1 = arith.constant 1 : index
    %c0_28 = arith.constant 0 : index
    %c0_29 = arith.constant 0 : index
    %38 = vector.load %arg8[%c1, %c0_28, %c0_29] : memref<3x128x128xbf16, #tpu.memory_space<vmem>>, vector<1x128x128xbf16>
    %39 = vector.shape_cast %38 : vector<1x128x128xbf16> to vector<128x128xbf16>
    %cst_30 = arith.constant dense<0.000000e+00> : vector<8x128xf32>
    %40 = tpu.matmul %37, %39, %cst_30 {dimension_numbers = #tpu.dot_dimension_numbers<[1], [0], [0], [1], [0, 0, 1, 1], [], []>} : vector<8x128xbf16>, vector<128x128xbf16>, vector<8x128xf32> -> vector<8x128xf32>
    %c1_31 = arith.constant 1 : index
    %c0_32 = arith.constant 0 : index
    %c0_33 = arith.constant 0 : index
    %41 = vector.load %arg9[%c1_31, %c0_32, %c0_33] : memref<3x1x128xf32, #tpu.memory_space<vmem>>, vector<1x1x128xf32>
    %42 = vector.shape_cast %41 : vector<1x1x128xf32> to vector<1x128xf32>
    %43 = vector.broadcast %42 : vector<1x128xf32> to vector<8x128xf32>
    %44 = arith.addf %40, %43 : vector<8x128xf32>
    %c1_34 = arith.constant 1 : index
    %c0_35 = arith.constant 0 : index
    %c0_36 = arith.constant 0 : index
    %45 = vector.load %arg10[%c1_34, %c0_35, %c0_36] : memref<3x8x128xf32, #tpu.memory_space<vmem>>, vector<1x8x128xf32>
    %46 = vector.shape_cast %45 : vector<1x8x128xf32> to vector<8x128xf32>
    %47 = vector.shape_cast %44 : vector<8x128xf32> to vector<1x8x128xf32>
    tpu.vector_store %arg10[%c1_34, %c0_35, %c0_36], %47 {strides = array<i32>} : memref<3x8x128xf32, #tpu.memory_space<vmem>>, vector<1x8x128xf32>,
    %48 = vector.extract_strided_slice %25 {offsets = [0, 256], sizes = [8, 128], strides = [1, 1]} : vector<8x384xbf16> to vector<8x128xbf16>
    %c2 = arith.constant 2 : index
    %c0_37 = arith.constant 0 : index
    %c0_38 = arith.constant 0 : index
    %49 = vector.load %arg8[%c2, %c0_37, %c0_38] : memref<3x128x128xbf16, #tpu.memory_space<vmem>>, vector<1x128x128xbf16>
    %50 = vector.shape_cast %49 : vector<1x128x128xbf16> to vector<128x128xbf16>
    %cst_39 = arith.constant dense<0.000000e+00> : vector<8x128xf32>
    %51 = tpu.matmul %48, %50, %cst_39 {dimension_numbers = #tpu.dot_dimension_numbers<[1], [0], [0], [1], [0, 0, 1, 1], [], []>} : vector<8x128xbf16>, vector<128x128xbf16>, vector<8x128xf32> -> vector<8x128xf32>
    %c2_40 = arith.constant 2 : index
    %c0_41 = arith.constant 0 : index
    %c0_42 = arith.constant 0 : index
    %52 = vector.load %arg9[%c2_40, %c0_41, %c0_42] : memref<3x1x128xf32, #tpu.memory_space<vmem>>, vector<1x1x128xf32>
    %53 = vector.shape_cast %52 : vector<1x1x128xf32> to vector<1x128xf32>
    %54 = vector.broadcast %53 : vector<1x128xf32> to vector<8x128xf32>
    %55 = arith.addf %51, %54 : vector<8x128xf32>
    %c2_43 = arith.constant 2 : index
    %c0_44 = arith.constant 0 : index
    %c0_45 = arith.constant 0 : index
    %56 = vector.load %arg10[%c2_43, %c0_44, %c0_45] : memref<3x8x128xf32, #tpu.memory_space<vmem>>, vector<1x8x128xf32>
    %57 = vector.shape_cast %56 : vector<1x8x128xf32> to vector<8x128xf32>
    %58 = vector.shape_cast %55 : vector<8x128xf32> to vector<1x8x128xf32>
    tpu.vector_store %arg10[%c2_43, %c0_44, %c0_45], %58 {strides = array<i32>} : memref<3x8x128xf32, #tpu.memory_space<vmem>>, vector<1x8x128xf32>,
    return
  }
  func.func @transform_0(%arg0: i32) -> (i32, i32) {
    %c0_i32 = arith.constant 0 : i32
    %c0_i32_0 = arith.constant 0 : i32
    return %arg0, %c0_i32 : i32, i32
  }
  func.func @transform_1(%arg0: i32) -> (i32, i32) {
    %c0_i32 = arith.constant 0 : i32
    %c0_i32_0 = arith.constant 0 : i32
    return %arg0, %c0_i32 : i32, i32
  }
  func.func @transform_2(%arg0: i32) -> (i32, i32) {
    %c0_i32 = arith.constant 0 : i32
    %c0_i32_0 = arith.constant 0 : i32
    %c0_i32_1 = arith.constant 0 : i32
    return %c0_i32, %c0_i32_0 : i32, i32
  }
  func.func @transform_3(%arg0: i32) -> (i32, i32) {
    %c0_i32 = arith.constant 0 : i32
    %c0_i32_0 = arith.constant 0 : i32
    %c0_i32_1 = arith.constant 0 : i32
    return %c0_i32, %c0_i32_0 : i32, i32
  }
  func.func @transform_4(%arg0: i32) -> (i32, i32) {
    %c0_i32 = arith.constant 0 : i32
    %c0_i32_0 = arith.constant 0 : i32
    %c0_i32_1 = arith.constant 0 : i32
    return %c0_i32, %c0_i32_0 : i32, i32
  }
  func.func @transform_5(%arg0: i32) -> (i32, i32) {
    %c0_i32 = arith.constant 0 : i32
    %c0_i32_0 = arith.constant 0 : i32
    %c0_i32_1 = arith.constant 0 : i32
    return %c0_i32, %c0_i32_0 : i32, i32
  }
  func.func @transform_6(%arg0: i32) -> (i32, i32) {
    %c0_i32 = arith.constant 0 : i32
    %c0_i32_0 = arith.constant 0 : i32
    %c0_i32_1 = arith.constant 0 : i32
    return %c0_i32, %c0_i32_0 : i32, i32
  }
  func.func @transform_7(%arg0: i32) -> (i32, i32, i32) {
    %c0_i32 = arith.constant 0 : i32
    %c0_i32_0 = arith.constant 0 : i32
    %c0_i32_1 = arith.constant 0 : i32
    %c0_i32_2 = arith.constant 0 : i32
    return %c0_i32, %c0_i32_0, %c0_i32_1 : i32, i32, i32
  }
  func.func @transform_8(%arg0: i32) -> (i32, i32, i32) {
    %c0_i32 = arith.constant 0 : i32
    %c0_i32_0 = arith.constant 0 : i32
    %c0_i32_1 = arith.constant 0 : i32
    %c0_i32_2 = arith.constant 0 : i32
    return %c0_i32, %c0_i32_0, %c0_i32_1 : i32, i32, i32
  }
  func.func @transform_9(%arg0: i32) -> (i32, i32, i32) {
    %c0_i32 = arith.constant 0 : i32
    %c0_i32_0 = arith.constant 0 : i32
    %c0_i32_1 = arith.constant 0 : i32
    return %c0_i32, %arg0, %c0_i32_0 : i32, i32, i32
  }
  func.func @transform_10(%arg0: i32) -> (i32, i32) {
    %c0_i32 = arith.constant 0 : i32
    %c0_i32_0 = arith.constant 0 : i32
    return %arg0, %c0_i32 : i32, i32
  }
}

</mosaic_0001>

<llo_original>
// kernel: sac_sharedbase_forward.1
$region0: #{sac_sharedbase_forward.1}
  #allocation0 [shape = 'u32[]', space=smem, size = 0x4, offset = 0x4, fixed_abs, tag = 'smem constant byte address 0x4 - core index']
  #allocation1 [shape = 'u32[72,128]{1,0:T(1,128)}', space=vmem, size = 0x9000, scoped, tag = 'internal scratch']
  %s0 = inlined_call_operand.vmem [shape: f32[8,16], index: 0, kind: input, shape index: {}]
  %s1 = inlined_call_operand.vmem [shape: f32[8,128], index: 1, kind: input, shape index: {}]
  %s2 = inlined_call_operand.vmem [shape: bf16[16,256], index: 2, kind: input, shape index: {}]
  %s3 = inlined_call_operand.vmem [shape: f32[1,256], index: 3, kind: input, shape index: {}]
  %s4 = inlined_call_operand.hbm [shape: bf16[128,128], index: 4, kind: input, shape index: {}]
  %s5 = inlined_call_operand.hbm [shape: bf16[128,384], index: 5, kind: input, shape index: {}]
  %s6 = inlined_call_operand.vmem [shape: f32[1,384], index: 6, kind: input, shape index: {}]
  %s7 = inlined_call_operand.hbm [shape: bf16[3,128,128], index: 7, kind: input, shape index: {}]
  %s8 = inlined_call_operand.vmem [shape: f32[3,1,128], index: 8, kind: input, shape index: {}]
  %s9 = inlined_call_operand.vmem [shape: f32[3,8,128], index: 9, kind: output, shape index: {0}]
  %s10 = inlined_call_operand.vmem [shape: f32[8,128], index: 10, kind: output, shape index: {1}]
  %11 = xla_tuple %s9, %s10
  %s12 = sld [smem:[#allocation0]]
  $region66: #{sac_sharedbase_forward.1} parent=0
    _
  %s14 = ssub.s32 1, %s12
  %s15 = scalar_select 0, %s14, %s12
  $region1: #{sac_sharedbase_forward.1} parent=0
    #allocation2 [shape = 'u8[32768]{0}', space=vmem, size = 0x8000, scoped, tag = 'input window, operand 4, single buffered']
    #allocation3 [shape = 's32[1]{0}', space=sflag, size = 0x4, scoped, tag = 'scoped memory for sac_sharedbase_forward.1']
    #allocation4 [shape = 'u8[98304]{0}', space=vmem, size = 0x18000, scoped, tag = 'input window, operand 5, single buffered']
    #allocation5 [shape = 's32[1]{0}', space=sflag, size = 0x4, scoped, tag = 'scoped memory for sac_sharedbase_forward.1']
    #allocation6 [shape = 'u8[98304]{0}', space=vmem, size = 0x18000, scoped, tag = 'input window, operand 7, single buffered']
    %16 = vsyncpa [#allocation3], 0
    %17 = vsyncpa [#allocation5], 0
    // Predicated region
    $region2: #{sac_sharedbase_forward.1} parent=1 // pred_check
      _
    $region3: #{sac_sharedbase_forward.1} parent=1 // pred_check_branch
      %19 = sbr.rel (0) target = $region5
    $region4: #{sac_sharedbase_forward.1} parent=1 // pred_region
      _
    $region5: #{sac_sharedbase_forward.1} parent=1 // pred_fallthru
      _
    // Predicated region
    $region6: #{sac_sharedbase_forward.1} parent=1 // pred_check
      _
    $region7: #{sac_sharedbase_forward.1} parent=1 // pred_check_branch
      %21 = sbr.rel (0) target = $region9
    $region8: #{sac_sharedbase_forward.1} parent=1 // pred_region
      _
    $region9: #{sac_sharedbase_forward.1} parent=1 // pred_fallthru
      _
    // Predicated region
    $region10: #{sac_sharedbase_forward.1} parent=1 // pred_check
      _
    $region11: #{sac_sharedbase_forward.1} parent=1 // pred_check_branch
      %23 = sbr.rel (0) target = $region13
    $region12: #{sac_sharedbase_forward.1} parent=1 // pred_region
      _
    $region13: #{sac_sharedbase_forward.1} parent=1 // pred_fallthru
      _
    // Predicated region
    $region14: #{sac_sharedbase_forward.1} parent=1 // pred_check
      _
    $region15: #{sac_sharedbase_forward.1} parent=1 // pred_check_branch
      %25 = sbr.rel (0) target = $region17
    $region16: #{sac_sharedbase_forward.1} parent=1 // pred_region
      _
    $region17: #{sac_sharedbase_forward.1} parent=1 // pred_fallthru
      _
    // Predicated region
    $region18: #{sac_sharedbase_forward.1} parent=1 // pred_check
      _
    $region19: #{sac_sharedbase_forward.1} parent=1 // pred_check_branch
      %27 = sbr.rel (0) target = $region21
    $region20: #{sac_sharedbase_forward.1} parent=1 // pred_region
      %29 = vsyncadd [#allocation3], 0
      %s30 = sshll.u32 %s4, 4
      %s31 = int_to_ptr.hbm [resolvable:$true] %s30
      %s32 = sshll.u32 [#allocation2], 4
      %s33 = int_to_ptr.vmem [resolvable:$true] %s32
      %38 = dma.hbm_to_vmem [thread:$0]  %s31, 1024, %s33, [#allocation3], 64, 64, 4
    $region21: #{sac_sharedbase_forward.1} parent=1 // pred_fallthru
      _
    // Predicated region
    $region22: #{sac_sharedbase_forward.1} parent=1 // pred_check
      _
    $region23: #{sac_sharedbase_forward.1} parent=1 // pred_check_branch
      %40 = sbr.rel (0) target = $region25
    $region24: #{sac_sharedbase_forward.1} parent=1 // pred_region
      %42 = vsyncadd [#allocation5], 0
      %s43 = sshll.u32 %s5, 4
      %s44 = int_to_ptr.hbm [resolvable:$true] %s43
      %s45 = sshll.u32 [#allocation4], 4
      %s46 = int_to_ptr.vmem [resolvable:$true] %s45
      %51 = dma.hbm_to_vmem [thread:$0]  %s44, 3072, %s46, [#allocation5], 192, 192, 12
    $region25: #{sac_sharedbase_forward.1} parent=1 // pred_fallthru
      _
    // Predicated region
    $region26: #{sac_sharedbase_forward.1} parent=1 // pred_check
      _
    $region27: #{sac_sharedbase_forward.1} parent=1 // pred_check_branch
      %53 = sbr.rel (0) target = $region29
    $region28: #{sac_sharedbase_forward.1} parent=1 // pred_region
      _
    $region29: #{sac_sharedbase_forward.1} parent=1 // pred_fallthru
      _
    // Predicated region
    $region30: #{sac_sharedbase_forward.1} parent=1 // pred_check
      _
    $region31: #{sac_sharedbase_forward.1} parent=1 // pred_check_branch
      %55 = sbr.rel (0) target = $region33
    $region32: #{sac_sharedbase_forward.1} parent=1 // pred_region
      %57 = vsyncadd [#allocation5], 0
      %s58 = sshll.u32 %s7, 4
      %s59 = int_to_ptr.hbm [resolvable:$true] %s58
      %s60 = sshll.u32 [#allocation6], 4
      %s61 = int_to_ptr.vmem [resolvable:$true] %s60
      %66 = dma.hbm_to_vmem [thread:$0]  %s59, 3072, %s61, [#allocation5], 64, 64, 4
    $region33: #{sac_sharedbase_forward.1} parent=1 // pred_fallthru
      _
    // Predicated region
    $region34: #{sac_sharedbase_forward.1} parent=1 // pred_check
      _
    $region35: #{sac_sharedbase_forward.1} parent=1 // pred_check_branch
      %68 = sbr.rel (0) target = $region37
    $region36: #{sac_sharedbase_forward.1} parent=1 // pred_region
      _
    $region37: #{sac_sharedbase_forward.1} parent=1 // pred_fallthru
      _
    // Predicated region
    $region38: #{sac_sharedbase_forward.1} parent=1 // pred_check
      _
    $region39: #{sac_sharedbase_forward.1} parent=1 // pred_check_branch
      %70 = sbr.rel (0) target = $region41
    $region40: #{sac_sharedbase_forward.1} parent=1 // pred_region
      %72 = dma.done [#allocation3], 1024
    $region41: #{sac_sharedbase_forward.1} parent=1 // pred_fallthru
      _
    // Predicated region
    $region42: #{sac_sharedbase_forward.1} parent=1 // pred_check
      _
    $region43: #{sac_sharedbase_forward.1} parent=1 // pred_check_branch
      %74 = sbr.rel (0) target = $region45
    $region44: #{sac_sharedbase_forward.1} parent=1 // pred_region
      %76 = dma.done [#allocation5], 3072
    $region45: #{sac_sharedbase_forward.1} parent=1 // pred_fallthru
      _
    // Predicated region
    $region46: #{sac_sharedbase_forward.1} parent=1 // pred_check
      _
    $region47: #{sac_sharedbase_forward.1} parent=1 // pred_check_branch
      %78 = sbr.rel (0) target = $region49
    $region48: #{sac_sharedbase_forward.1} parent=1 // pred_region
      %80 = dma.done [#allocation5], 3072
    $region49: #{sac_sharedbase_forward.1} parent=1 // pred_fallthru
      _
    %v82 = vld [vmem:[%s0] sm:$0xff]
    %v83 = vpack.c.bf16 %v82, %v82
    %v84 = vld [vmem:[%s1] sm:$0xff]
    %v85 = vpack.c.bf16 %v84, %v84
    %v86 = vld [vmem:[%s2] sm:$0xff]
    %v87 = vld [vmem:[%s2 + $0x8] sm:$0xff]
    %v88 = vld [vmem:[%s3] sm:$0x3]
    %v90 = vperm.slane %v88, 0
    %v91 = vperm.slane %v88, 1
    %v96 = vunpack.c.l.b16 %v86
    %v97 = vunpack.c.h.b16 %v86
    %v98 = vunpack.c.l.b16 %v87
    %v99 = vunpack.c.h.b16 %v87
    %v100 = vpack.c.b16 %v98, %v96
    %v101 = vpack.c.b16 %v99, %v97
    %vm104 = vcmask 130048
    %v106 = vsel %vm104, %v83, 0
    %108 = vmatpush.bf16.msra.mxu0 0
    %109 = vmatpush.bf16.msra.mxu0 0
    %110 = vmatpush.bf16.msra.mxu0 0
    %111 = vmatpush.bf16.msra.mxu0 0
    %112 = vmatpush.bf16.msra.mxu0 0
    %113 = vmatpush.bf16.msra.mxu0 0
    %114 = vmatpush.bf16.msra.mxu0 0
    %115 = vmatpush.bf16.msra.mxu0 %v100
    %116 = vmatmul.bf16.gmra.mxu0 %v106
    %v117 = vpop.f32.mrf.mxu0
    %v118 = vadd.f32 %v90, %v117
    %v119 = vpop.f32.mrf.mxu0
    %120 = vdwg.mxu0
    %121 = vmatpush.bf16.msra.mxu0 0
    %122 = vmatpush.bf16.msra.mxu0 0
    %123 = vmatpush.bf16.msra.mxu0 0
    %124 = vmatpush.bf16.msra.mxu0 0
    %125 = vmatpush.bf16.msra.mxu0 0
    %126 = vmatpush.bf16.msra.mxu0 0
    %127 = vmatpush.bf16.msra.mxu0 0
    %128 = vmatpush.bf16.msra.mxu0 %v101
    %129 = vmatmul.bf16.gmra.mxu0 %v106
    %v130 = vpop.f32.mrf.mxu0
    %v131 = vadd.f32 %v91, %v130
    %v132 = vpop.f32.mrf.mxu0
    %133 = vdwg.mxu0
    %v134 = vtanh.pop %v118
    %v135 = vld [vmem:[#allocation2] sm:$0xf]
    %v136 = vld [vmem:[#allocation2 + $0x4] sm:$0xf]
    %v137 = vld [vmem:[#allocation2 + $0x8] sm:$0xf]
    %v138 = vld [vmem:[#allocation2 + $0xc] sm:$0xf]
    %v139 = vld [vmem:[#allocation2 + $0x10] sm:$0xf]
    %v140 = vld [vmem:[#allocation2 + $0x14] sm:$0xf]
    %v141 = vld [vmem:[#allocation2 + $0x18] sm:$0xf]
    %v142 = vld [vmem:[#allocation2 + $0x1c] sm:$0xf]
    %v143 = vld [vmem:[#allocation2 + $0x20] sm:$0xf]
    %v144 = vld [vmem:[#allocation2 + $0x24] sm:$0xf]
    %v145 = vld [vmem:[#allocation2 + $0x28] sm:$0xf]
    %v146 = vld [vmem:[#allocation2 + $0x2c] sm:$0xf]
    %v147 = vld [vmem:[#allocation2 + $0x30] sm:$0xf]
    %v148 = vld [vmem:[#allocation2 + $0x34] sm:$0xf]
    %v149 = vld [vmem:[#allocation2 + $0x38] sm:$0xf]
    %v150 = vld [vmem:[#allocation2 + $0x3c] sm:$0xf]
    %v167 = vunpack.c.l.b16 %v135
    %v168 = vunpack.c.l.b16 %v136
    %v169 = vunpack.c.l.b16 %v137
    %v170 = vunpack.c.l.b16 %v138
    %v171 = vunpack.c.l.b16 %v139
    %v172 = vunpack.c.l.b16 %v140
    %v173 = vunpack.c.l.b16 %v141
    %v174 = vunpack.c.l.b16 %v142
    %v175 = vunpack.c.l.b16 %v143
    %v176 = vunpack.c.l.b16 %v144
    %v177 = vunpack.c.l.b16 %v145
    %v178 = vunpack.c.l.b16 %v146
    %v179 = vunpack.c.l.b16 %v147
    %v180 = vunpack.c.l.b16 %v148
    %v181 = vunpack.c.l.b16 %v149
    %v182 = vunpack.c.l.b16 %v150
    %v183 = vpack.c.b16 %v168, %v167
    %v184 = vpack.c.b16 %v170, %v169
    %v185 = vpack.c.b16 %v172, %v171
    %v186 = vpack.c.b16 %v174, %v173
    %v187 = vpack.c.b16 %v176, %v175
    %v188 = vpack.c.b16 %v178, %v177
    %v189 = vpack.c.b16 %v180, %v179
    %v190 = vpack.c.b16 %v182, %v181
    %199 = vmatpush.bf16.msra.mxu0 %v190
    %200 = vmatpush.bf16.msra.mxu0 %v189
    %201 = vmatpush.bf16.msra.mxu0 %v188
    %202 = vmatpush.bf16.msra.mxu0 %v187
    %203 = vmatpush.bf16.msra.mxu0 %v186
    %204 = vmatpush.bf16.msra.mxu0 %v185
    %205 = vmatpush.bf16.msra.mxu0 %v184
    %206 = vmatpush.bf16.msra.mxu0 %v183
    %207 = vmatmul.bf16.gmra.mxu0 %v85
    %v208 = vpop.f32.mrf.mxu0
    %v209 = vadd.f32 0.0, %v208
    %v210 = vpop.f32.mrf.mxu0
    %211 = vdwg.mxu0
    %v212 = vadd.f32 %v131, %v209
    %v213 = vtanh.pop %v212
    %214 = vst [vmem:[%s10] sm:$0xff] %v213
    %v215 = vpack.c.bf16 %v134, %v134
    %v216 = vld [vmem:[#allocation4] sm:$0xff]
    %v217 = vld [vmem:[#allocation4 + $0x8] sm:$0xf]
    %v218 = vld [vmem:[#allocation4 + $0xc] sm:$0xff]
    %v219 = vld [vmem:[#allocation4 + $0x14] sm:$0xf]
    %v220 = vld [vmem:[#allocation4 + $0x18] sm:$0xff]
    %v221 = vld [vmem:[#allocation4 + $0x20] sm:$0xf]
    %v222 = vld [vmem:[#allocation4 + $0x24] sm:$0xff]
    %v223 = vld [vmem:[#allocation4 + $0x2c] sm:$0xf]
    %v224 = vld [vmem:[#allocation4 + $0x30] sm:$0xff]
    %v225 = vld [vmem:[#allocation4 + $0x38] sm:$0xf]
    %v226 = vld [vmem:[#allocation4 + $0x3c] sm:$0xff]
    %v227 = vld [vmem:[#allocation4 + $0x44] sm:$0xf]
    %v228 = vld [vmem:[#allocation4 + $0x48] sm:$0xff]
    %v229 = vld [vmem:[#allocation4 + $0x50] sm:$0xf]
    %v230 = vld [vmem:[#allocation4 + $0x54] sm:$0xff]
    %v231 = vld [vmem:[#allocation4 + $0x5c] sm:$0xf]
    %v232 = vld [vmem:[#allocation4 + $0x60] sm:$0xff]
    %v233 = vld [vmem:[#allocation4 + $0x68] sm:$0xf]
    %v234 = vld [vmem:[#allocation4 + $0x6c] sm:$0xff]
    %v235 = vld [vmem:[#allocation4 + $0x74] sm:$0xf]
    %v236 = vld [vmem:[#allocation4 + $0x78] sm:$0xff]
    %v237 = vld [vmem:[#allocation4 + $0x80] sm:$0xf]
    %v238 = vld [vmem:[#allocation4 + $0x84] sm:$0xff]
    %v239 = vld [vmem:[#allocation4 + $0x8c] sm:$0xf]
    %v240 = vld [vmem:[#allocation4 + $0x90] sm:$0xff]
    %v241 = vld [vmem:[#allocation4 + $0x98] sm:$0xf]
    %v242 = vld [vmem:[#allocation4 + $0x9c] sm:$0xff]
    %v243 = vld [vmem:[#allocation4 + $0xa4] sm:$0xf]
    %v244 = vld [vmem:[#allocation4 + $0xa8] sm:$0xff]
    %v245 = vld [vmem:[#allocation4 + $0xb0] sm:$0xf]
    %v246 = vld [vmem:[#allocation4 + $0xb4] sm:$0xff]
    %v247 = vld [vmem:[#allocation4 + $0xbc] sm:$0xf]
    %v248 = vld [vmem:[%s6] sm:$0x7]
    %v250 = vperm.slane %v248, 0
    %v251 = vperm.slane %v248, 1
    %v252 = vperm.slane %v248, 2
    %v288 = vunpack.c.l.b16 %v216
    %v289 = vunpack.c.h.b16 %v216
    %v290 = vunpack.c.l.b16 %v217
    %v291 = vunpack.c.l.b16 %v218
    %v292 = vunpack.c.h.b16 %v218
    %v293 = vunpack.c.l.b16 %v219
    %v294 = vunpack.c.l.b16 %v220
    %v295 = vunpack.c.h.b16 %v220
    %v296 = vunpack.c.l.b16 %v221
    %v297 = vunpack.c.l.b16 %v222
    %v298 = vunpack.c.h.b16 %v222
    %v299 = vunpack.c.l.b16 %v223
    %v300 = vunpack.c.l.b16 %v224
    %v301 = vunpack.c.h.b16 %v224
    %v302 = vunpack.c.l.b16 %v225
    %v303 = vunpack.c.l.b16 %v226
    %v304 = vunpack.c.h.b16 %v226
    %v305 = vunpack.c.l.b16 %v227
    %v306 = vunpack.c.l.b16 %v228
    %v307 = vunpack.c.h.b16 %v228
    %v308 = vunpack.c.l.b16 %v229
    %v309 = vunpack.c.l.b16 %v230
    %v310 = vunpack.c.h.b16 %v230
    %v311 = vunpack.c.l.b16 %v231
    %v312 = vunpack.c.l.b16 %v232
    %v313 = vunpack.c.h.b16 %v232
    %v314 = vunpack.c.l.b16 %v233
    %v315 = vunpack.c.l.b16 %v234
    %v316 = vunpack.c.h.b16 %v234
    %v317 = vunpack.c.l.b16 %v235
    %v318 = vunpack.c.l.b16 %v236
    %v319 = vunpack.c.h.b16 %v236
    %v320 = vunpack.c.l.b16 %v237
    %v321 = vunpack.c.l.b16 %v238
    %v322 = vunpack.c.h.b16 %v238
    %v323 = vunpack.c.l.b16 %v239
    %v324 = vunpack.c.l.b16 %v240
    %v325 = vunpack.c.h.b16 %v240
    %v326 = vunpack.c.l.b16 %v241
    %v327 = vunpack.c.l.b16 %v242
    %v328 = vunpack.c.h.b16 %v242
    %v329 = vunpack.c.l.b16 %v243
    %v330 = vunpack.c.l.b16 %v244
    %v331 = vunpack.c.h.b16 %v244
    %v332 = vunpack.c.l.b16 %v245
    %v333 = vunpack.c.l.b16 %v246
    %v334 = vunpack.c.h.b16 %v246
    %v335 = vunpack.c.l.b16 %v247
    %v336 = vpack.c.b16 %v291, %v288
    %v337 = vpack.c.b16 %v292, %v289
    %v338 = vpack.c.b16 %v293, %v290
    %v339 = vpack.c.b16 %v297, %v294
    %v340 = vpack.c.b16 %v298, %v295
    %v341 = vpack.c.b16 %v299, %v296
    %v342 = vpack.c.b16 %v303, %v300
    %v343 = vpack.c.b16 %v304, %v301
    %v344 = vpack.c.b16 %v305, %v302
    %v345 = vpack.c.b16 %v309, %v306
    %v346 = vpack.c.b16 %v310, %v307
    %v347 = vpack.c.b16 %v311, %v308
    %v348 = vpack.c.b16 %v315, %v312
    %v349 = vpack.c.b16 %v316, %v313
    %v350 = vpack.c.b16 %v317, %v314
    %v351 = vpack.c.b16 %v321, %v318
    %v352 = vpack.c.b16 %v322, %v319
    %v353 = vpack.c.b16 %v323, %v320
    %v354 = vpack.c.b16 %v327, %v324
    %v355 = vpack.c.b16 %v328, %v325
    %v356 = vpack.c.b16 %v329, %v326
    %v357 = vpack.c.b16 %v333, %v330
    %v358 = vpack.c.b16 %v334, %v331
    %v359 = vpack.c.b16 %v335, %v332
    %384 = vmatpush.bf16.msra.mxu0 %v357
    %385 = vmatpush.bf16.msra.mxu0 %v354
    %386 = vmatpush.bf16.msra.mxu0 %v351
    %387 = vmatpush.bf16.msra.mxu0 %v348
    %388 = vmatpush.bf16.msra.mxu0 %v345
    %389 = vmatpush.bf16.msra.mxu0 %v342
    %390 = vmatpush.bf16.msra.mxu0 %v339
    %391 = vmatpush.bf16.msra.mxu0 %v336
    %392 = vmatmul.bf16.gmra.mxu0 %v215
    %v393 = vpop.f32.mrf.mxu0
    %v394 = vadd.f32 %v250, %v393
    %v395 = vpop.f32.mrf.mxu0
    %396 = vdwg.mxu0
    %397 = vmatpush.bf16.msra.mxu0 %v358
    %398 = vmatpush.bf16.msra.mxu0 %v355
    %399 = vmatpush.bf16.msra.mxu0 %v352
    %400 = vmatpush.bf16.msra.mxu0 %v349
    %401 = vmatpush.bf16.msra.mxu0 %v346
    %402 = vmatpush.bf16.msra.mxu0 %v343
    %403 = vmatpush.bf16.msra.mxu0 %v340
    %404 = vmatpush.bf16.msra.mxu0 %v337
    %405 = vmatmul.bf16.gmra.mxu0 %v215
    %v406 = vpop.f32.mrf.mxu0
    %v407 = vadd.f32 %v251, %v406
    %v408 = vpop.f32.mrf.mxu0
    %409 = vdwg.mxu0
    %410 = vmatpush.bf16.msra.mxu0 %v359
    %411 = vmatpush.bf16.msra.mxu0 %v356
    %412 = vmatpush.bf16.msra.mxu0 %v353
    %413 = vmatpush.bf16.msra.mxu0 %v350
    %414 = vmatpush.bf16.msra.mxu0 %v347
    %415 = vmatpush.bf16.msra.mxu0 %v344
    %416 = vmatpush.bf16.msra.mxu0 %v341
    %417 = vmatpush.bf16.msra.mxu0 %v338
    %418 = vmatmul.bf16.gmra.mxu0 %v215
    %v419 = vpop.f32.mrf.mxu0
    %v420 = vadd.f32 %v252, %v419
    %v421 = vpop.f32.mrf.mxu0
    %422 = vdwg.mxu0
    %v423 = vmax.f32 %v394, 0.0
    %v424 = vmax.f32 %v407, 0.0
    %v425 = vmax.f32 %v420, 0.0
    %v426 = vpack.c.bf16 %v424, %v423
    %v427 = vpack.c.bf16 %v425, %v425
    %v428 = vld [vmem:[#allocation6] sm:$0xf]
    %v429 = vld [vmem:[#allocation6 + $0x4] sm:$0xf]
    %v430 = vld [vmem:[#allocation6 + $0x8] sm:$0xf]
    %v431 = vld [vmem:[#allocation6 + $0xc] sm:$0xf]
    %v432 = vld [vmem:[#allocation6 + $0x10] sm:$0xf]
    %v433 = vld [vmem:[#allocation6 + $0x14] sm:$0xf]
    %v434 = vld [vmem:[#allocation6 + $0x18] sm:$0xf]
    %v435 = vld [vmem:[#allocation6 + $0x1c] sm:$0xf]
    %v436 = vld [vmem:[#allocation6 + $0x20] sm:$0xf]
    %v437 = vld [vmem:[#allocation6 + $0x24] sm:$0xf]
    %v438 = vld [vmem:[#allocation6 + $0x28] sm:$0xf]
    %v439 = vld [vmem:[#allocation6 + $0x2c] sm:$0xf]
    %v440 = vld [vmem:[#allocation6 + $0x30] sm:$0xf]
    %v441 = vld [vmem:[#allocation6 + $0x34] sm:$0xf]
    %v442 = vld [vmem:[#allocation6 + $0x38] sm:$0xf]
    %v443 = vld [vmem:[#allocation6 + $0x3c] sm:$0xf]
    %v444 = vld [vmem:[%s8] sm:$0x1]
    %v446 = vperm.slane %v444, 0
    %v464 = vunpack.c.l.b16 %v428
    %v465 = vunpack.c.l.b16 %v429
    %v466 = vunpack.c.l.b16 %v430
    %v467 = vunpack.c.l.b16 %v431
    %v468 = vunpack.c.l.b16 %v432
    %v469 = vunpack.c.l.b16 %v433
    %v470 = vunpack.c.l.b16 %v434
    %v471 = vunpack.c.l.b16 %v435
    %v472 = vunpack.c.l.b16 %v436
    %v473 = vunpack.c.l.b16 %v437
    %v474 = vunpack.c.l.b16 %v438
    %v475 = vunpack.c.l.b16 %v439
    %v476 = vunpack.c.l.b16 %v440
    %v477 = vunpack.c.l.b16 %v441
    %v478 = vunpack.c.l.b16 %v442
    %v479 = vunpack.c.l.b16 %v443
    %v480 = vpack.c.b16 %v465, %v464
    %v481 = vpack.c.b16 %v467, %v466
    %v482 = vpack.c.b16 %v469, %v468
    %v483 = vpack.c.b16 %v471, %v470
    %v484 = vpack.c.b16 %v473, %v472
    %v485 = vpack.c.b16 %v475, %v474
    %v486 = vpack.c.b16 %v477, %v476
    %v487 = vpack.c.b16 %v479, %v478
    %496 = vmatpush.bf16.msra.mxu0 %v487
    %497 = vmatpush.bf16.msra.mxu0 %v486
    %498 = vmatpush.bf16.msra.mxu0 %v485
    %499 = vmatpush.bf16.msra.mxu0 %v484
    %500 = vmatpush.bf16.msra.mxu0 %v483
    %501 = vmatpush.bf16.msra.mxu0 %v482
    %502 = vmatpush.bf16.msra.mxu0 %v481
    %503 = vmatpush.bf16.msra.mxu0 %v480
    %504 = vmatmul.bf16.gmra.mxu0 %v426
    %v505 = vpop.f32.mrf.mxu0
    %v506 = vadd.f32 %v446, %v505
    %v507 = vpop.f32.mrf.mxu0
    %508 = vdwg.mxu0
    %509 = vst [vmem:[%s9] sm:$0xff] %v506
    %s510 = scalar_lea.vmem [#allocation6], 64
    %v511 = vld [vmem:[%s510] sm:$0xf]
    %v512 = vld [vmem:[%s510 + $0x4] sm:$0xf]
    %v513 = vld [vmem:[%s510 + $0x8] sm:$0xf]
    %v514 = vld [vmem:[%s510 + $0xc] sm:$0xf]
    %v515 = vld [vmem:[%s510 + $0x10] sm:$0xf]
    %v516 = vld [vmem:[%s510 + $0x14] sm:$0xf]
    %v517 = vld [vmem:[%s510 + $0x18] sm:$0xf]
    %v518 = vld [vmem:[%s510 + $0x1c] sm:$0xf]
    %v519 = vld [vmem:[%s510 + $0x20] sm:$0xf]
    %v520 = vld [vmem:[%s510 + $0x24] sm:$0xf]
    %v521 = vld [vmem:[%s510 + $0x28] sm:$0xf]
    %v522 = vld [vmem:[%s510 + $0x2c] sm:$0xf]
    %v523 = vld [vmem:[%s510 + $0x30] sm:$0xf]
    %v524 = vld [vmem:[%s510 + $0x34] sm:$0xf]
    %v525 = vld [vmem:[%s510 + $0x38] sm:$0xf]
    %v526 = vld [vmem:[%s510 + $0x3c] sm:$0xf]
    %s527 = scalar_lea.vmem %s8, 1
    %v528 = vld [vmem:[%s527] sm:$0x1]
    %v530 = vperm.slane %v528, 0
    %v533 = vunpack.c.h.b16 %v426
    %v534 = vpack.c.b16 %v533, %v533
    %v552 = vunpack.c.l.b16 %v511
    %v553 = vunpack.c.l.b16 %v512
    %v554 = vunpack.c.l.b16 %v513
    %v555 = vunpack.c.l.b16 %v514
    %v556 = vunpack.c.l.b16 %v515
    %v557 = vunpack.c.l.b16 %v516
    %v558 = vunpack.c.l.b16 %v517
    %v559 = vunpack.c.l.b16 %v518
    %v560 = vunpack.c.l.b16 %v519
    %v561 = vunpack.c.l.b16 %v520
    %v562 = vunpack.c.l.b16 %v521
    %v563 = vunpack.c.l.b16 %v522
    %v564 = vunpack.c.l.b16 %v523
    %v565 = vunpack.c.l.b16 %v524
    %v566 = vunpack.c.l.b16 %v525
    %v567 = vunpack.c.l.b16 %v526
    %v568 = vpack.c.b16 %v553, %v552
    %v569 = vpack.c.b16 %v555, %v554
    %v570 = vpack.c.b16 %v557, %v556
    %v571 = vpack.c.b16 %v559, %v558
    %v572 = vpack.c.b16 %v561, %v560
    %v573 = vpack.c.b16 %v563, %v562
    %v574 = vpack.c.b16 %v565, %v564
    %v575 = vpack.c.b16 %v567, %v566
    %584 = vmatpush.bf16.msra.mxu0 %v575
    %585 = vmatpush.bf16.msra.mxu0 %v574
    %586 = vmatpush.bf16.msra.mxu0 %v573
    %587 = vmatpush.bf16.msra.mxu0 %v572
    %588 = vmatpush.bf16.msra.mxu0 %v571
    %589 = vmatpush.bf16.msra.mxu0 %v570
    %590 = vmatpush.bf16.msra.mxu0 %v569
    %591 = vmatpush.bf16.msra.mxu0 %v568
    %592 = vmatmul.bf16.gmra.mxu0 %v534
    %v593 = vpop.f32.mrf.mxu0
    %v594 = vadd.f32 %v530, %v593
    %v595 = vpop.f32.mrf.mxu0
    %596 = vdwg.mxu0
    %s597 = scalar_lea.vmem %s9, 8
    %598 = vst [vmem:[%s597] sm:$0xff] %v594
    %s599 = scalar_lea.vmem [#allocation6], 128
    %v600 = vld [vmem:[%s599] sm:$0xf]
    %v601 = vld [vmem:[%s599 + $0x4] sm:$0xf]
    %v602 = vld [vmem:[%s599 + $0x8] sm:$0xf]
    %v603 = vld [vmem:[%s599 + $0xc] sm:$0xf]
    %v604 = vld [vmem:[%s599 + $0x10] sm:$0xf]
    %v605 = vld [vmem:[%s599 + $0x14] sm:$0xf]
    %v606 = vld [vmem:[%s599 + $0x18] sm:$0xf]
    %v607 = vld [vmem:[%s599 + $0x1c] sm:$0xf]
    %v608 = vld [vmem:[%s599 + $0x20] sm:$0xf]
    %v609 = vld [vmem:[%s599 + $0x24] sm:$0xf]
    %v610 = vld [vmem:[%s599 + $0x28] sm:$0xf]
    %v611 = vld [vmem:[%s599 + $0x2c] sm:$0xf]
    %v612 = vld [vmem:[%s599 + $0x30] sm:$0xf]
    %v613 = vld [vmem:[%s599 + $0x34] sm:$0xf]
    %v614 = vld [vmem:[%s599 + $0x38] sm:$0xf]
    %v615 = vld [vmem:[%s599 + $0x3c] sm:$0xf]
    %s616 = scalar_lea.vmem %s8, 2
    %v617 = vld [vmem:[%s616] sm:$0x1]
    %v619 = vperm.slane %v617, 0
    %v637 = vunpack.c.l.b16 %v600
    %v638 = vunpack.c.l.b16 %v601
    %v639 = vunpack.c.l.b16 %v602
    %v640 = vunpack.c.l.b16 %v603
    %v641 = vunpack.c.l.b16 %v604
    %v642 = vunpack.c.l.b16 %v605
    %v643 = vunpack.c.l.b16 %v606
    %v644 = vunpack.c.l.b16 %v607
    %v645 = vunpack.c.l.b16 %v608
    %v646 = vunpack.c.l.b16 %v609
    %v647 = vunpack.c.l.b16 %v610
    %v648 = vunpack.c.l.b16 %v611
    %v649 = vunpack.c.l.b16 %v612
    %v650 = vunpack.c.l.b16 %v613
    %v651 = vunpack.c.l.b16 %v614
    %v652 = vunpack.c.l.b16 %v615
    %v653 = vpack.c.b16 %v638, %v637
    %v654 = vpack.c.b16 %v640, %v639
    %v655 = vpack.c.b16 %v642, %v641
    %v656 = vpack.c.b16 %v644, %v643
    %v657 = vpack.c.b16 %v646, %v645
    %v658 = vpack.c.b16 %v648, %v647
    %v659 = vpack.c.b16 %v650, %v649
    %v660 = vpack.c.b16 %v652, %v651
    %669 = vmatpush.bf16.msra.mxu0 %v660
    %670 = vmatpush.bf16.msra.mxu0 %v659
    %671 = vmatpush.bf16.msra.mxu0 %v658
    %672 = vmatpush.bf16.msra.mxu0 %v657
    %673 = vmatpush.bf16.msra.mxu0 %v656
    %674 = vmatpush.bf16.msra.mxu0 %v655
    %675 = vmatpush.bf16.msra.mxu0 %v654
    %676 = vmatpush.bf16.msra.mxu0 %v653
    %677 = vmatmul.bf16.gmra.mxu0 %v427
    %v678 = vpop.f32.mrf.mxu0
    %v679 = vadd.f32 %v619, %v678
    %v680 = vpop.f32.mrf.mxu0
    %681 = vdwg.mxu0
    %s682 = scalar_lea.vmem %s9, 16
    %683 = vst [vmem:[%s682] sm:$0xff] %v679
    // Predicated region
    $region50: #{sac_sharedbase_forward.1} parent=1 // pred_check
      _
    $region51: #{sac_sharedbase_forward.1} parent=1 // pred_check_branch
      %685 = sbr.rel (0) target = $region53
    $region52: #{sac_sharedbase_forward.1} parent=1 // pred_region
      _
    $region53: #{sac_sharedbase_forward.1} parent=1 // pred_fallthru
      _
    // Predicated region
    $region54: #{sac_sharedbase_forward.1} parent=1 // pred_check
      _
    $region55: #{sac_sharedbase_forward.1} parent=1 // pred_check_branch
      %687 = sbr.rel (0) target = $region57
    $region56: #{sac_sharedbase_forward.1} parent=1 // pred_region
      _
    $region57: #{sac_sharedbase_forward.1} parent=1 // pred_fallthru
      _
    // Predicated region
    $region58: #{sac_sharedbase_forward.1} parent=1 // pred_check
      _
    $region59: #{sac_sharedbase_forward.1} parent=1 // pred_check_branch
      %689 = sbr.rel (0) target = $region61
    $region60: #{sac_sharedbase_forward.1} parent=1 // pred_region
      _
    $region61: #{sac_sharedbase_forward.1} parent=1 // pred_fallthru
      _
    // Predicated region
    $region62: #{sac_sharedbase_forward.1} parent=1 // pred_check
      _
    $region63: #{sac_sharedbase_forward.1} parent=1 // pred_check_branch
      %691 = sbr.rel (0) target = $region65
    $region64: #{sac_sharedbase_forward.1} parent=1 // pred_region
      _
    $region65: #{sac_sharedbase_forward.1} parent=1 // pred_fallthru
      _
    %692 = vsyncpa [#allocation3], 1
    %693 = vsyncpa [#allocation5], 1

</llo_original>
